<compile_context>
chip_gen: v7x
topology: tpu7x:2x2x1
jax: 0.10.0
libtpu: 0.0.40
codegen_flags: <defaults>
</compile_context>

<pallas_src>
import jax
import jax.numpy as jnp
import numpy as np
from jax.experimental import pallas as pl
from jax.experimental.pallas import tpu as pltpu


# Parameter-index maps reproducing the symmetry of build_kernel_and_bias().
_PARAM_INDEX = {
    3: np.array([[0, 1, 0],
                 [1, 2, 1],
                 [0, 1, 0]], dtype=np.int32),
    5: np.array([[3, 5, 4, 5, 3],
                 [5, 0, 1, 0, 5],
                 [4, 1, 2, 1, 4],
                 [5, 0, 1, 0, 5],
                 [3, 5, 4, 5, 3]], dtype=np.int32),
    7: np.array([[6, 8, 9, 7, 9, 8, 6],
                 [8, 3, 5, 4, 5, 3, 8],
                 [9, 5, 0, 1, 0, 5, 9],
                 [7, 4, 1, 2, 1, 4, 7],
                 [9, 5, 0, 1, 0, 5, 9],
                 [8, 3, 5, 4, 5, 3, 8],
                 [6, 8, 9, 7, 9, 8, 6]], dtype=np.int32),
}

# Per-block working set target (double-buffered in/out blocks + f32 temps).
# Kept ~24 MiB so the same tiling is safe on v7x (64 MiB physical VMEM) as
# well as v5e/v6e (128 MiB physical).
_VMEM_BLOCK_BUDGET = 24 * 1024 * 1024
# Explicit scoped-VMEM limit: above v5e's 16 MiB / v6e-v7x's 32 MiB defaults,
# below v7x's 64 MiB physical capacity.
_VMEM_LIMIT_BYTES = 48 * 1024 * 1024


def build_kernel_and_bias(params, kernel_size):
    """Expand the n_params learnable values into the symmetric KxK kernel."""
    if kernel_size not in _PARAM_INDEX:
        raise NotImplementedError("Kernel size not supported")
    idx = jnp.asarray(_PARAM_INDEX[kernel_size])
    kernel = params.astype(jnp.float32)[idx]           # (K, K)
    bias = -jnp.sum(kernel) / 2.0                       # scalar
    return kernel, bias


def _make_conv_kernel(K, H, W):
    HW = H * W
    p = (K - 1) // 2

    def conv_kernel(w_ref, x_ref, o_ref):
        # w_ref: SMEM f32[K*K + 1]   (K*K taps + bias), scalar loads only.
        # x_ref: VMEM (tb, H*W)      images flattened -> lane-dense blocks.
        # o_ref: VMEM (tb, H*W)
        x = x_ref[...].astype(jnp.float32)
        # Column index (j = flat_index mod W) of every lane; used to patch the
        # horizontal circular wrap after a flat lane roll.
        col = jax.lax.broadcasted_iota(jnp.int32, x.shape, 1) % W
        # Bias folded into the accumulator init (saves a full-tile add).
        acc = jnp.full(x.shape, w_ref[K * K], dtype=jnp.float32)

        for b in range(K):          # kernel column -> horizontal offset db
            db = b - p
            if db == 0:
                xb = x
            else:
                # Horizontal circular shift by db within each W-long row: a
                # flat roll is correct except for the |db| lanes per row that
                # cross the row boundary; fix those with a second roll and a
                # static per-lane select (hoisted once per column offset).
                main = jnp.roll(x, -db, axis=1)
                if db > 0:
                    fix = jnp.roll(x, W - db, axis=1)
                    wrap = col >= (W - db)
                else:
                    fix = jnp.roll(x, -(W + db), axis=1)
                    wrap = col < (-db)
                xb = jnp.where(wrap, fix, main)
            for a in range(K):      # kernel row -> vertical offset da
                da = a - p
                # Vertical circular shift == flat roll by da*W (exact,
                # including the top/bottom wrap).
                tap = xb if da == 0 else jnp.roll(xb, -da * W, axis=1)
                acc = acc + w_ref[a * K + b] * tap

        o_ref[...] = acc.astype(o_ref.dtype)

    return conv_kernel


def _pick_batch_tiling(B, per_image_bytes):
    """Return (batch_tile, padded_batch) derived from the VMEM budget."""
    if per_image_bytes > _VMEM_BLOCK_BUDGET:
        # TODO(synk): huge images would need a second grid axis over H with a
        # (K-1)-row halo; not implemented (whole-image blocks only).
        raise NotImplementedError("single image exceeds the VMEM block budget")
    # Minimum number of grid steps so one block fits the budget.
    n_steps = max(1, -(-(B * per_image_bytes) // _VMEM_BLOCK_BUDGET))
    # Give v7x's two TensorCores something to do when it costs no padding.
    if n_steps == 1 and B >= 16 and B % 16 == 0:
        n_steps = 2
    if n_steps == 1:
        return B, B                       # full-extent block: always legal
    tb = -(-B // n_steps)
    tb = -(-tb // 8) * 8                  # sublane-aligned tile
    Bp = -(-B // tb) * tb                 # pad batch up to a multiple of tb
    return tb, Bp


def parametrized_conv2d(x, params, kernel_size, stride=1, use_bias=True):
    """x: (B, 1, H, W); params: (n_params,). Matches ParametrizedConv2d.forward."""
    assert stride == 1  # TODO(synk): strided output not implemented (module default is 1).
    B, C, H, W = x.shape
    assert C == 1, "only in_channel of 1 is supported (as in the PyTorch module)"
    K = kernel_size
    p = (K - 1) // 2
    assert p <= H and p <= W, "circular padding requires pad <= spatial size"

    kernel, bias = build_kernel_and_bias(params, K)
    if not use_bias:
        bias = jnp.zeros((), jnp.float32)
    wvec = jnp.concatenate(
        [kernel.reshape(-1), bias.reshape(1)]).astype(jnp.float32)

    HW = H * W
    x2 = x.reshape(B, HW)                 # lane-dense flat layout, native dtype

    itemsize = jnp.dtype(x.dtype).itemsize
    # in + out blocks are double-buffered by the pipeline; ~4 f32 temporaries
    # (accumulator + roll/select scratch) live inside the kernel.
    per_image = 2 * 2 * HW * itemsize + 4 * HW * 4
    tb, Bp = _pick_batch_tiling(B, per_image)
    if Bp != B:
        x2 = jnp.pad(x2, ((0, Bp - B), (0, 0)))

    out = pl.pallas_call(
        _make_conv_kernel(K, H, W),
        out_shape=jax.ShapeDtypeStruct((Bp, HW), x.dtype),
        grid_spec=pltpu.PrefetchScalarGridSpec(
            num_scalar_prefetch=0,
            grid=(Bp // tb,),
            in_specs=[
                pl.BlockSpec(memory_space=pltpu.SMEM),            # taps + bias
                pl.BlockSpec((tb, HW), lambda i: (i, 0)),          # images
            ],
            out_specs=pl.BlockSpec((tb, HW), lambda i: (i, 0)),
        ),
        compiler_params=pltpu.CompilerParams(
            dimension_semantics=("parallel",),
            vmem_limit_bytes=_VMEM_LIMIT_BYTES),
    )(wvec, x2)

    if Bp != B:
        out = out[:B]
    return out.reshape(B, 1, H, W)


def _reference(x, params, kernel_size, use_bias=True):
    """Pure-JAX reference matching the PyTorch forward."""
    K = kernel_size
    p = (K - 1) // 2
    kernel, bias = build_kernel_and_bias(params, K)
    xpad = jnp.pad(x.astype(jnp.float32),
                   ((0, 0), (0, 0), (p, p), (p, p)), mode="wrap")
    out = jax.lax.conv_general_dilated(
        xpad, kernel.reshape(1, 1, K, K),
        window_strides=(1, 1), padding="VALID",
        dimension_numbers=("NCHW", "OIHW", "NCHW"))
    if use_bias:
        out = out + bias
    return out.astype(x.dtype)


if __name__ == "__main__":
    key = jax.random.PRNGKey(0)
    kx, kp = jax.random.split(key)

    # Module requires in_channels == out_channels == 1.
    B, C, H, W = 2, 1, 16, 16
    kernel_size = 3

    x = jax.random.normal(kx, (B, C, H, W), dtype=jnp.float32)
    params = jax.random.uniform(kp, (3,), dtype=jnp.float32)   # ~ torch.rand(3)

    out = parametrized_conv2d(x, params, kernel_size)
    out = jax.block_until_ready(out)

    ref = jax.block_until_ready(_reference(x, params, kernel_size))
    assert out.shape == (B, 1, H, W), out.shape
    assert jnp.allclose(out, ref, rtol=1e-5, atol=1e-5), (
        float(jnp.max(jnp.abs(out - ref))))

    print("KERNEL_OK")
</pallas_src>

<mosaic_0001>
module attributes {stable_mosaic.version = 11 : i64} {
  func.func @conv_kernel(%arg0: i32, %arg1: memref<10xf32, #tpu.memory_space<smem>>, %arg2: memref<2x256xf32, #tpu.memory_space<vmem>>, %arg3: memref<2x256xf32, #tpu.memory_space<vmem>>) attributes {dimension_semantics = [#tpu.dimension_semantics<parallel>], iteration_bounds = array<i64: 1>, scalar_prefetch = 0 : i64, scratch_operands = 0 : i64, tpu.core_type = #tpu.core_type<tc>, window_params = [{transform_indices = @transform_0, window_bounds = array<i64: 10>}, {transform_indices = @transform_1, window_bounds = array<i64: 2, 256>}, {transform_indices = @transform_2, window_bounds = array<i64: 2, 256>}]} {
    %c0 = arith.constant 0 : index
    %c0_0 = arith.constant 0 : index
    %0 = vector.load %arg2[%c0, %c0_0] : memref<2x256xf32, #tpu.memory_space<vmem>>, vector<2x256xf32>
    %1 = tpu.iota {dimensions = array<i32: 1>} : vector<2x256xi32>
    %c16_i32 = arith.constant 16 : i32
    %c0_i32 = arith.constant 0 : i32
    %2 = arith.cmpi eq, %c16_i32, %c0_i32 : i32
    %c1_i32 = arith.constant 1 : i32
    %3 = arith.select %2, %c1_i32, %c16_i32 : i32
    %4 = vector.broadcast %3 : i32 to vector<2x256xi32>
    %5 = arith.remsi %1, %4 : vector<2x256xi32>
    %c0_i32_1 = arith.constant 0 : i32
    %6 = vector.broadcast %c0_i32_1 : i32 to vector<2x256xi32>
    %7 = arith.cmpi ne, %5, %6 : vector<2x256xi32>
    %c0_i32_2 = arith.constant 0 : i32
    %8 = vector.broadcast %c0_i32_2 : i32 to vector<2x256xi32>
    %9 = arith.cmpi slt, %5, %8 : vector<2x256xi32>
    %c0_i32_3 = arith.constant 0 : i32
    %10 = arith.cmpi slt, %3, %c0_i32_3 : i32
    %11 = vector.broadcast %10 : i1 to vector<2x256xi1>
    %12 = vector.broadcast %11 : vector<2x256xi1> to vector<2x256xi1>
    %13 = arith.xori %9, %12 : vector<2x256xi1>
    %14 = arith.andi %13, %7 : vector<2x256xi1>
    %15 = vector.broadcast %3 : i32 to vector<2x256xi32>
    %16 = arith.addi %5, %15 : vector<2x256xi32>
    %17 = arith.select %14, %16, %5 : vector<2x256xi1>, vector<2x256xi32>
    %c9 = arith.constant 9 : index
    %18 = memref.load %arg1[%c9] : memref<10xf32, #tpu.memory_space<smem>>
    %19 = vector.broadcast %18 : f32 to vector<2x256xf32>
    %20 = vector.extract_strided_slice %0 {offsets = [0, 255], sizes = [2, 1], strides = [1, 1]} : vector<2x256xf32> to vector<2x1xf32>
    %21 = vector.extract_strided_slice %0 {offsets = [0, 0], sizes = [2, 255], strides = [1, 1]} : vector<2x256xf32> to vector<2x255xf32>
    %22 = tpu.concatenate %20, %21 in 1 : vector<2x1xf32>, vector<2x255xf32> -> vector<2x256xf32>
    %23 = vector.extract_strided_slice %0 {offsets = [0, 15], sizes = [2, 241], strides = [1, 1]} : vector<2x256xf32> to vector<2x241xf32>
    %24 = vector.extract_strided_slice %0 {offsets = [0, 0], sizes = [2, 15], strides = [1, 1]} : vector<2x256xf32> to vector<2x15xf32>
    %25 = tpu.concatenate %23, %24 in 1 : vector<2x241xf32>, vector<2x15xf32> -> vector<2x256xf32>
    %c1_i32_4 = arith.constant 1 : i32
    %26 = vector.broadcast %c1_i32_4 : i32 to vector<2x256xi32>
    %27 = arith.cmpi slt, %17, %26 : vector<2x256xi32>
    %28 = arith.select %27, %25, %22 : vector<2x256xi1>, vector<2x256xf32>
    %29 = vector.extract_strided_slice %28 {offsets = [0, 240], sizes = [2, 16], strides = [1, 1]} : vector<2x256xf32> to vector<2x16xf32>
    %30 = vector.extract_strided_slice %28 {offsets = [0, 0], sizes = [2, 240], strides = [1, 1]} : vector<2x256xf32> to vector<2x240xf32>
    %31 = tpu.concatenate %29, %30 in 1 : vector<2x16xf32>, vector<2x240xf32> -> vector<2x256xf32>
    %c0_5 = arith.constant 0 : index
    %32 = memref.load %arg1[%c0_5] : memref<10xf32, #tpu.memory_space<smem>>
    %33 = vector.broadcast %32 : f32 to vector<2x256xf32>
    %34 = arith.mulf %33, %31 : vector<2x256xf32>
    %35 = arith.addf %19, %34 : vector<2x256xf32>
    %c3 = arith.constant 3 : index
    %36 = memref.load %arg1[%c3] : memref<10xf32, #tpu.memory_space<smem>>
    %37 = vector.broadcast %36 : f32 to vector<2x256xf32>
    %38 = arith.mulf %37, %28 : vector<2x256xf32>
    %39 = arith.addf %35, %38 : vector<2x256xf32>
    %40 = vector.extract_strided_slice %28 {offsets = [0, 16], sizes = [2, 240], strides = [1, 1]} : vector<2x256xf32> to vector<2x240xf32>
    %41 = vector.extract_strided_slice %28 {offsets = [0, 0], sizes = [2, 16], strides = [1, 1]} : vector<2x256xf32> to vector<2x16xf32>
    %42 = tpu.concatenate %40, %41 in 1 : vector<2x240xf32>, vector<2x16xf32> -> vector<2x256xf32>
    %c6 = arith.constant 6 : index
    %43 = memref.load %arg1[%c6] : memref<10xf32, #tpu.memory_space<smem>>
    %44 = vector.broadcast %43 : f32 to vector<2x256xf32>
    %45 = arith.mulf %44, %42 : vector<2x256xf32>
    %46 = arith.addf %39, %45 : vector<2x256xf32>
    %47 = vector.extract_strided_slice %0 {offsets = [0, 240], sizes = [2, 16], strides = [1, 1]} : vector<2x256xf32> to vector<2x16xf32>
    %48 = vector.extract_strided_slice %0 {offsets = [0, 0], sizes = [2, 240], strides = [1, 1]} : vector<2x256xf32> to vector<2x240xf32>
    %49 = tpu.concatenate %47, %48 in 1 : vector<2x16xf32>, vector<2x240xf32> -> vector<2x256xf32>
    %c1 = arith.constant 1 : index
    %50 = memref.load %arg1[%c1] : memref<10xf32, #tpu.memory_space<smem>>
    %51 = vector.broadcast %50 : f32 to vector<2x256xf32>
    %52 = arith.mulf %51, %49 : vector<2x256xf32>
    %53 = arith.addf %46, %52 : vector<2x256xf32>
    %c4 = arith.constant 4 : index
    %54 = memref.load %arg1[%c4] : memref<10xf32, #tpu.memory_space<smem>>
    %55 = vector.broadcast %54 : f32 to vector<2x256xf32>
    %56 = arith.mulf %55, %0 : vector<2x256xf32>
    %57 = arith.addf %53, %56 : vector<2x256xf32>
    %58 = vector.extract_strided_slice %0 {offsets = [0, 16], sizes = [2, 240], strides = [1, 1]} : vector<2x256xf32> to vector<2x240xf32>
    %59 = vector.extract_strided_slice %0 {offsets = [0, 0], sizes = [2, 16], strides = [1, 1]} : vector<2x256xf32> to vector<2x16xf32>
    %60 = tpu.concatenate %58, %59 in 1 : vector<2x240xf32>, vector<2x16xf32> -> vector<2x256xf32>
    %c7 = arith.constant 7 : index
    %61 = memref.load %arg1[%c7] : memref<10xf32, #tpu.memory_space<smem>>
    %62 = vector.broadcast %61 : f32 to vector<2x256xf32>
    %63 = arith.mulf %62, %60 : vector<2x256xf32>
    %64 = arith.addf %57, %63 : vector<2x256xf32>
    %65 = vector.extract_strided_slice %0 {offsets = [0, 1], sizes = [2, 255], strides = [1, 1]} : vector<2x256xf32> to vector<2x255xf32>
    %66 = vector.extract_strided_slice %0 {offsets = [0, 0], sizes = [2, 1], strides = [1, 1]} : vector<2x256xf32> to vector<2x1xf32>
    %67 = tpu.concatenate %65, %66 in 1 : vector<2x255xf32>, vector<2x1xf32> -> vector<2x256xf32>
    %68 = vector.extract_strided_slice %0 {offsets = [0, 241], sizes = [2, 15], strides = [1, 1]} : vector<2x256xf32> to vector<2x15xf32>
    %69 = vector.extract_strided_slice %0 {offsets = [0, 0], sizes = [2, 241], strides = [1, 1]} : vector<2x256xf32> to vector<2x241xf32>
    %70 = tpu.concatenate %68, %69 in 1 : vector<2x15xf32>, vector<2x241xf32> -> vector<2x256xf32>
    %c15_i32 = arith.constant 15 : i32
    %71 = vector.broadcast %c15_i32 : i32 to vector<2x256xi32>
    %72 = arith.cmpi sge, %17, %71 : vector<2x256xi32>
    %73 = arith.select %72, %70, %67 : vector<2x256xi1>, vector<2x256xf32>
    %74 = vector.extract_strided_slice %73 {offsets = [0, 240], sizes = [2, 16], strides = [1, 1]} : vector<2x256xf32> to vector<2x16xf32>
    %75 = vector.extract_strided_slice %73 {offsets = [0, 0], sizes = [2, 240], strides = [1, 1]} : vector<2x256xf32> to vector<2x240xf32>
    %76 = tpu.concatenate %74, %75 in 1 : vector<2x16xf32>, vector<2x240xf32> -> vector<2x256xf32>
    %c2 = arith.constant 2 : index
    %77 = memref.load %arg1[%c2] : memref<10xf32, #tpu.memory_space<smem>>
    %78 = vector.broadcast %77 : f32 to vector<2x256xf32>
    %79 = arith.mulf %78, %76 : vector<2x256xf32>
    %80 = arith.addf %64, %79 : vector<2x256xf32>
    %c5 = arith.constant 5 : index
    %81 = memref.load %arg1[%c5] : memref<10xf32, #tpu.memory_space<smem>>
    %82 = vector.broadcast %81 : f32 to vector<2x256xf32>
    %83 = arith.mulf %82, %73 : vector<2x256xf32>
    %84 = arith.addf %80, %83 : vector<2x256xf32>
    %85 = vector.extract_strided_slice %73 {offsets = [0, 16], sizes = [2, 240], strides = [1, 1]} : vector<2x256xf32> to vector<2x240xf32>
    %86 = vector.extract_strided_slice %73 {offsets = [0, 0], sizes = [2, 16], strides = [1, 1]} : vector<2x256xf32> to vector<2x16xf32>
    %87 = tpu.concatenate %85, %86 in 1 : vector<2x240xf32>, vector<2x16xf32> -> vector<2x256xf32>
    %c8 = arith.constant 8 : index
    %88 = memref.load %arg1[%c8] : memref<10xf32, #tpu.memory_space<smem>>
    %89 = vector.broadcast %88 : f32 to vector<2x256xf32>
    %90 = arith.mulf %89, %87 : vector<2x256xf32>
    %91 = arith.addf %84, %90 : vector<2x256xf32>
    %c0_6 = arith.constant 0 : index
    %c0_7 = arith.constant 0 : index
    %92 = vector.load %arg3[%c0_6, %c0_7] : memref<2x256xf32, #tpu.memory_space<vmem>>, vector<2x256xf32>
    tpu.vector_store %arg3[%c0_6, %c0_7], %91 {strides = array<i32>} : memref<2x256xf32, #tpu.memory_space<vmem>>, vector<2x256xf32>,
    return
  }
  func.func @transform_0(%arg0: i32) -> i32 {
    %c0_i32 = arith.constant 0 : i32
    %c0_i32_0 = arith.constant 0 : i32
    return %c0_i32 : i32
  }
  func.func @transform_1(%arg0: i32) -> (i32, i32) {
    %c0_i32 = arith.constant 0 : i32
    %c0_i32_0 = arith.constant 0 : i32
    return %arg0, %c0_i32 : i32, i32
  }
  func.func @transform_2(%arg0: i32) -> (i32, i32) {
    %c0_i32 = arith.constant 0 : i32
    %c0_i32_0 = arith.constant 0 : i32
    return %arg0, %c0_i32 : i32, i32
  }
}

</mosaic_0001>

<llo_original>
// kernel: tpu_custom_call.1
$region0: #{tpu_custom_call.1}
  #allocation0 [shape = 'u32[]', space=smem, size = 0x4, offset = 0x4, fixed_abs, tag = 'smem constant byte address 0x4 - core index']
  #allocation1 [shape = 'u32[144,128]{1,0:T(1,128)}', space=vmem, size = 0x12000, scoped, tag = 'internal scratch']
  %s0 = inlined_call_operand.hbm [shape: f32[10], index: 0, kind: input, shape index: {}]
  %s1 = inlined_call_operand.hbm [shape: f32[2,256], index: 1, kind: input, shape index: {}]
  %s2 = inlined_call_operand.hbm [shape: f32[2,256], index: 2, kind: output, shape index: {}]
  %s3 = sld [smem:[#allocation0]]
  $region26: #{tpu_custom_call.1} parent=0
    _
  %s5 = ssub.s32 1, %s3
  %s6 = scalar_select 0, %s5, %s3
  $region1: #{tpu_custom_call.1} parent=0
    #allocation2 [shape = 'u8[512]{0}', space=smem, size = 0x200, scoped, tag = 'input window, operand 0, single buffered']
    #allocation3 [shape = 's32[1]{0}', space=sflag, size = 0x4, scoped, tag = 'scoped memory for tpu_custom_call.1']
    #allocation4 [shape = 's32[1]{0}', space=sflag, size = 0x4, scoped, tag = 'scoped memory for tpu_custom_call.1']
    #allocation5 [shape = 's32[1]{0}', space=sflag, size = 0x4, scoped, tag = 'scoped memory for tpu_custom_call.1']
    #allocation6 [shape = 'u8[2048]{0}', space=vmem, size = 0x800, scoped, tag = 'input window, operand 1, single buffered']
    #allocation7 [shape = 'u8[2048]{0}', space=vmem, size = 0x800, scoped, tag = 'output window, operand 0, single buffered']
    %7 = vsyncpa [#allocation5], 0
    %8 = vsyncpa [#allocation3], 0
    %9 = vsyncpa [#allocation4], 0
    // Predicated region
    $region2: #{tpu_custom_call.1} parent=1 // pred_check
      _
    $region3: #{tpu_custom_call.1} parent=1 // pred_check_branch
      %11 = sbr.rel (0) target = $region5
    $region4: #{tpu_custom_call.1} parent=1 // pred_region
      %s13 = ssub.s32 16, 16
      %14 = vsyncadd [#allocation5], %s13
      %17 = dma.hbm_to_smem %s0, 16, [#allocation2], [#allocation5]
    $region5: #{tpu_custom_call.1} parent=1 // pred_fallthru
      _
    // Predicated region
    $region6: #{tpu_custom_call.1} parent=1 // pred_check
      _
    $region7: #{tpu_custom_call.1} parent=1 // pred_check_branch
      %19 = sbr.rel (0) target = $region9
    $region8: #{tpu_custom_call.1} parent=1 // pred_region
      %s21 = ssub.s32 64, 64
      %22 = vsyncadd [#allocation3], %s21
      %s24 = sshll.u32 [#allocation6], 4
      %s25 = int_to_ptr.vmem [resolvable:$true] %s24
      %27 = dma.hbm_to_vmem [thread:$0]  %s1, 64, %s25, [#allocation3]
    $region9: #{tpu_custom_call.1} parent=1 // pred_fallthru
      _
    // Predicated region
    $region10: #{tpu_custom_call.1} parent=1 // pred_check
      _
    $region11: #{tpu_custom_call.1} parent=1 // pred_check_branch
      %29 = sbr.rel (0) target = $region13
    $region12: #{tpu_custom_call.1} parent=1 // pred_region
      %30 = dma.done [#allocation5], 16
    $region13: #{tpu_custom_call.1} parent=1 // pred_fallthru
      _
    // Predicated region
    $region14: #{tpu_custom_call.1} parent=1 // pred_check
      _
    $region15: #{tpu_custom_call.1} parent=1 // pred_check_branch
      %32 = sbr.rel (0) target = $region17
    $region16: #{tpu_custom_call.1} parent=1 // pred_region
      %33 = dma.done [#allocation3], 64
    $region17: #{tpu_custom_call.1} parent=1 // pred_fallthru
      _
    %34 = sfence
    %v35 = vld [vmem:[#allocation6] sm:$0xf]
    %v36 = vlaneseq
    %v37 = vand.u32 %v36, 127
    %v38 = vadd.s32 %v37, 128
    %vm39 = vcmp.lt.s32.totalorder %v37, 0
    %v40 = vsub.s32 0, %v37
    %v41 = vsel %vm39, %v40, %v37
    %v42 = vshrl.u32 %v41, 4
    %v43 = vand.u32 %v41, 15
    %v44 = vsub.s32 0, %v43
    %v45 = vsel %vm39, %v44, %v43
    %vm46 = vcmp.lt.s32.totalorder %v38, 0
    %v47 = vsub.s32 0, %v38
    %v48 = vsel %vm46, %v47, %v38
    %v49 = vshrl.u32 %v48, 4
    %v50 = vand.u32 %v48, 15
    %v51 = vsub.s32 0, %v50
    %v52 = vsel %vm46, %v51, %v50
    %vm53 = vcmp.ne.s32.totalorder %v45, 0
    %vm54 = vcmp.ne.s32.totalorder %v52, 0
    %vm55 = vcmp.lt.s32.totalorder %v45, 0
    %vm56 = vcmp.lt.s32.totalorder %v52, 0
    %vm57 = vmand %vm55, %vm53
    %vm58 = vmand %vm56, %vm54
    %v59 = vadd.s32 %v45, 16
    %v60 = vadd.s32 %v52, 16
    %v61 = vsel %vm57, %v59, %v45
    %v62 = vsel %vm58, %v60, %v52
    %s63 = sld [smem:[#allocation2 + $0x9]]
    %v64 = vstv %s63
    %v67 = vunpack.c.l.s4 1983009808
    %v68 = vunpack.c.0.s8 %v67
    %v69 = vlaneseq
    %v70 = vshrl.u32 %v69, 7
    %v71 = vsub.s32 %v68, %v70
    %v72 = vrot.slane %v35, %v71
    %v73 = vcombine.high %v72, %v72
    %74 = vrot.lane.b32.xlu0 %v73, 1
    %v75 = vpop.permute.xlu0 %74
    %77 = vrot.lane.b32.xlu0 %v72, 1
    %v78 = vpop.permute.xlu0 %77
    %vm79 = vcmask 7168
    %v80 = vsel %vm79, %v78, %v75
    %v83 = vsel %vm79, %v75, %v78
    %84 = vrot.lane.b32.xlu0 %v72, 113
    %v85 = vpop.permute.xlu0 %84
    %86 = vrot.lane.b32.xlu0 %v73, 113
    %v87 = vpop.permute.xlu0 %86
    %vm88 = vcmask 924672
    %v89 = vsel %vm88, %v85, %v87
    %v93 = vsel %vm88, %v87, %v85
    %vm94 = vcmp.lt.s32.totalorder %v61, 1
    %vm95 = vcmp.lt.s32.totalorder %v62, 1
    %v96 = vsel %vm94, %v89, %v83
    %v97 = vsel %vm95, %v93, %v80
    %99 = vrot.lane.b32.xlu0 %v97, 16
    %v100 = vpop.permute.xlu0 %99
    %103 = vrot.lane.b32.xlu0 %v96, 16
    %v104 = vpop.permute.xlu0 %103
    %vm105 = vcmask 130048
    %v106 = vsel %vm105, %v104, %v100
    %v109 = vsel %vm105, %v100, %v104
    %s110 = sld [smem:[#allocation2]]
    %v111 = vstv %s110
    %v112 = vmul.f32 %v111, %v109
    %v113 = vmul.f32 %v111, %v106
    %v114 = vadd.f32 %v64, %v112
    %v115 = vadd.f32 %v64, %v113
    %s116 = sld [smem:[#allocation2 + $0x3]]
    %v117 = vstv %s116
    %v118 = vmul.f32 %v117, %v96
    %v119 = vmul.f32 %v117, %v97
    %v120 = vadd.f32 %v114, %v118
    %v121 = vadd.f32 %v115, %v119
    %122 = vrot.lane.b32.xlu0 %v96, 112
    %v123 = vpop.permute.xlu0 %122
    %124 = vrot.lane.b32.xlu0 %v97, 112
    %v125 = vpop.permute.xlu0 %124
    %vm126 = vcmask 916480
    %v127 = vsel %vm126, %v123, %v125
    %v131 = vsel %vm126, %v125, %v123
    %s132 = sld [smem:[#allocation2 + $0x6]]
    %v133 = vstv %s132
    %v134 = vmul.f32 %v133, %v127
    %v135 = vmul.f32 %v133, %v131
    %v136 = vadd.f32 %v120, %v134
    %v137 = vadd.f32 %v121, %v135
    %138 = vrot.lane.b32.xlu0 %v73, 16
    %v139 = vpop.permute.xlu0 %138
    %141 = vrot.lane.b32.xlu0 %v72, 16
    %v142 = vpop.permute.xlu0 %141
    %v143 = vsel %vm105, %v142, %v139
    %v146 = vsel %vm105, %v139, %v142
    %s147 = sld [smem:[#allocation2 + $0x1]]
    %v148 = vstv %s147
    %v149 = vmul.f32 %v148, %v146
    %v150 = vmul.f32 %v148, %v143
    %v151 = vadd.f32 %v136, %v149
    %v152 = vadd.f32 %v137, %v150
    %s153 = sld [smem:[#allocation2 + $0x4]]
    %v154 = vstv %s153
    %v155 = vmul.f32 %v154, %v35
    %v158 = vunpack.c.l.s4 1983009808
    %v159 = vunpack.c.0.s8 %v158
    %v160 = vlaneseq
    %v161 = vshrl.u32 %v160, 7
    %v162 = vsub.s32 %v159, %v161
    %v163 = vrot.slane %v155, %v162
    %v164 = vcombine.high %v163, %v163
    %v167 = vadd.f32 %v151, %v163
    %v168 = vadd.f32 %v152, %v164
    %169 = vrot.lane.b32.xlu0 %v72, 112
    %v170 = vpop.permute.xlu0 %169
    %171 = vrot.lane.b32.xlu0 %v73, 112
    %v172 = vpop.permute.xlu0 %171
    %v173 = vsel %vm126, %v170, %v172
    %v177 = vsel %vm126, %v172, %v170
    %s178 = sld [smem:[#allocation2 + $0x7]]
    %v179 = vstv %s178
    %v180 = vmul.f32 %v179, %v173
    %v181 = vmul.f32 %v179, %v177
    %v182 = vadd.f32 %v167, %v180
    %v183 = vadd.f32 %v168, %v181
    %184 = vrot.lane.b32.xlu0 %v72, 127
    %v185 = vpop.permute.xlu0 %184
    %186 = vrot.lane.b32.xlu0 %v73, 127
    %v187 = vpop.permute.xlu0 %186
    %vm188 = vcmask 1039360
    %v189 = vsel %vm188, %v185, %v187
    %v193 = vsel %vm188, %v187, %v185
    %194 = vrot.lane.b32.xlu0 %v73, 15
    %v195 = vpop.permute.xlu0 %194
    %197 = vrot.lane.b32.xlu0 %v72, 15
    %v198 = vpop.permute.xlu0 %197
    %vm199 = vcmask 121856
    %v200 = vsel %vm199, %v198, %v195
    %v203 = vsel %vm199, %v195, %v198
    %vm204 = vcmp.ge.s32.totalorder %v61, 15
    %vm205 = vcmp.ge.s32.totalorder %v62, 15
    %v206 = vsel %vm204, %v203, %v189
    %v207 = vsel %vm205, %v200, %v193
    %209 = vrot.lane.b32.xlu0 %v207, 16
    %v210 = vpop.permute.xlu0 %209
    %213 = vrot.lane.b32.xlu0 %v206, 16
    %v214 = vpop.permute.xlu0 %213
    %v215 = vsel %vm105, %v214, %v210
    %v218 = vsel %vm105, %v210, %v214
    %s219 = sld [smem:[#allocation2 + $0x2]]
    %v220 = vstv %s219
    %v221 = vmul.f32 %v220, %v218
    %v222 = vmul.f32 %v220, %v215
    %v223 = vadd.f32 %v182, %v221
    %v224 = vadd.f32 %v183, %v222
    %s225 = sld [smem:[#allocation2 + $0x5]]
    %v226 = vstv %s225
    %v227 = vmul.f32 %v226, %v206
    %v228 = vmul.f32 %v226, %v207
    %v229 = vadd.f32 %v223, %v227
    %v230 = vadd.f32 %v224, %v228
    %231 = vrot.lane.b32.xlu0 %v206, 112
    %v232 = vpop.permute.xlu0 %231
    %233 = vrot.lane.b32.xlu0 %v207, 112
    %v234 = vpop.permute.xlu0 %233
    %v235 = vsel %vm126, %v232, %v234
    %v239 = vsel %vm126, %v234, %v232
    %s240 = sld [smem:[#allocation2 + $0x8]]
    %v241 = vstv %s240
    %v242 = vmul.f32 %v241, %v235
    %v243 = vmul.f32 %v241, %v239
    %v244 = vadd.f32 %v229, %v242
    %v245 = vadd.f32 %v230, %v243
    %v248 = vcombine.low %v244, %v245
    %v250 = vunpack.c.l.s4 1983009808
    %v251 = vunpack.c.0.s8 %v250
    %v252 = vlaneseq
    %v253 = vshrl.u32 %v252, 7
    %v254 = vsub.s32 %v251, %v253
    %v255 = vrot.slane %v248, %v254
    %257 = vst [vmem:[#allocation7] sm:$0xf] %v255
    // Predicated region
    $region18: #{tpu_custom_call.1} parent=1 // pred_check
      _
    $region19: #{tpu_custom_call.1} parent=1 // pred_check_branch
      %259 = sbr.rel (0) target = $region21
    $region20: #{tpu_custom_call.1} parent=1 // pred_region
      %s261 = ssub.s32 64, 64
      %262 = vsyncadd [#allocation4], %s261
      %s264 = sshll.u32 [#allocation7], 4
      %s265 = int_to_ptr.vmem [resolvable:$true] %s264
      %267 = dma.vmem_to_hbm [thread:$0]  %s265, 64, %s2, [#allocation4]
    $region21: #{tpu_custom_call.1} parent=1 // pred_fallthru
      _
    // Predicated region
    $region22: #{tpu_custom_call.1} parent=1 // pred_check
      _
    $region23: #{tpu_custom_call.1} parent=1 // pred_check_branch
      %269 = sbr.rel (0) target = $region25
    $region24: #{tpu_custom_call.1} parent=1 // pred_region
      %270 = dma.done [#allocation4], 64
    $region25: #{tpu_custom_call.1} parent=1 // pred_fallthru
      _
    %271 = vsyncpa [#allocation3], 1
    %272 = vsyncpa [#allocation4], 1
    %273 = vsyncpa [#allocation5], 1

</llo_original>
